<compile_context>
chip_gen: v7x
topology: tpu7x:2x2x1
jax: 0.10.0
libtpu: 0.0.40
codegen_flags: <defaults>
</compile_context>

<pallas_src>
import functools

import jax
import jax.numpy as jnp
from jax.experimental import pallas as pl
from jax.experimental.pallas import tpu as pltpu


def _wtanh_kernel(c1_ref, c2_ref, x_ref, o_ref, *, compute_dtype):
    # y = c1 * tanh(x) + c2 * x   (c1, c2 precomputed per-feature in the wrapper)
    x = x_ref[...].astype(compute_dtype)              # (tr, tc)
    c1 = c1_ref[...].astype(compute_dtype)            # (1, tc) -> broadcasts over rows
    c2 = c2_ref[...].astype(compute_dtype)
    o_ref[...] = (c1 * jnp.tanh(x) + c2 * x).astype(o_ref.dtype)


def _tpu_config():
    """Generation-aware tile target (in f32-equivalent elements) and VMEM limit."""
    try:
        kind = jax.devices()[0].device_kind.lower()
    except Exception:
        kind = ""
    if "v7" in kind:
        # 64 MiB physical VMEM: raise scoped limit deliberately but leave headroom.
        return dict(target_elems=1 << 20, vmem_limit=48 << 20, bf16_ok=True)
    if "v5" in kind:
        # No bf16 VPU/EUP; keep tiles modest so f32 intermediates fit comfortably.
        return dict(target_elems=512 << 10, vmem_limit=64 << 20, bf16_ok=False)
    if "v6" in kind:
        return dict(target_elems=1 << 20, vmem_limit=64 << 20, bf16_ok=True)
    # Unknown backend: conservative defaults, no explicit VMEM override.
    return dict(target_elems=512 << 10, vmem_limit=None, bf16_ok=False)


def _pick_block_cols(dim):
    if dim <= 128:
        return dim                       # full-extent block (always legal)
    # Any multiple of 128 (lane-dense, unmasked vst); tail column block handled by cdiv.
    return min(1024, (dim // 128) * 128)


def _pick_block_rows(n_rows, block_cols, target_elems, min_steps=8):
    if n_rows <= 8:
        return n_rows                    # full-extent block (legal even if not 8-aligned)
    rows = (target_elems // max(1, block_cols)) // 8 * 8
    rows = max(8, rows)
    # Keep >= ~min_steps grid steps along rows: preserves double-buffer overlap and gives
    # v7x at least 2 blocks to shard across its two TensorCores.
    cap = max(8, ((-(-n_rows // min_steps)) + 7) // 8 * 8)
    rows = min(rows, cap)
    rows = min(rows, ((n_rows + 7) // 8) * 8)   # never (much) exceed the array extent
    return rows


def wtanh(x, a, b, *, monotone=True, block_rows=None, block_cols=None,
          compute_dtype=None):
    """x: (N, dim); a, b: (dim,). Returns (N, dim), same dtype as x."""
    n, dim = x.shape
    cfg = _tpu_config()

    # Hoist parameter-only math (softplus chain) out of the per-step kernel body.
    af = a.astype(jnp.float32)
    bf = b.astype(jnp.float32)
    if monotone:
        sa = jax.nn.softplus(af)
        sb = jax.nn.softplus(bf)
        c1 = sa - sb              # y = (sp_a - sp_b) * tanh(x) + sp_b * x
        c2 = sb
    else:
        c1 = af + bf              # y = (a + b) * tanh(x) - b * x
        c2 = -bf
    c1 = c1.reshape(1, dim)
    c2 = c2.reshape(1, dim)

    # Sub-128 feature dim: fold rows into the lane dimension so stores stay lane-dense.
    x2, n2, dim2 = x, n, dim
    folded = False
    if dim < 128 and 128 % dim == 0 and (n * dim) % 128 == 0:
        fold = 128 // dim
        x2 = x.reshape(n // fold, 128)
        c1 = jnp.tile(c1, (1, fold))
        c2 = jnp.tile(c2, (1, fold))
        n2, dim2 = x2.shape
        folded = True

    if block_cols is None:
        block_cols = _pick_block_cols(dim2)
    if block_rows is None:
        block_rows = _pick_block_rows(n2, block_cols, cfg["target_elems"])

    if compute_dtype is None:
        use_bf16 = cfg["bf16_ok"] and x.dtype == jnp.bfloat16
        compute_dtype = jnp.bfloat16 if use_bf16 else jnp.float32

    # Columns as the OUTER grid axis: c1/c2 block index is constant along the inner
    # (rows) axis, so their tiny blocks are not re-fetched every step.
    grid = (pl.cdiv(dim2, block_cols), pl.cdiv(n2, block_rows))

    cp_kwargs = dict(dimension_semantics=("parallel", "parallel"))
    if cfg["vmem_limit"] is not None:
        cp_kwargs["vmem_limit_bytes"] = cfg["vmem_limit"]

    out2 = pl.pallas_call(
        functools.partial(_wtanh_kernel, compute_dtype=compute_dtype),
        out_shape=jax.ShapeDtypeStruct((n2, dim2), x.dtype),
        grid_spec=pltpu.PrefetchScalarGridSpec(
            num_scalar_prefetch=0,
            grid=grid,
            in_specs=[
                pl.BlockSpec((1, block_cols), lambda j, i: (0, j)),            # c1
                pl.BlockSpec((1, block_cols), lambda j, i: (0, j)),            # c2
                pl.BlockSpec((block_rows, block_cols), lambda j, i: (i, j)),   # x
            ],
            out_specs=pl.BlockSpec((block_rows, block_cols), lambda j, i: (i, j)),
        ),
        compiler_params=pltpu.CompilerParams(**cp_kwargs),
    )(c1, c2, x2)

    return out2.reshape(n, dim) if folded else out2


def wtanh_ref(x, a, b, *, monotone=True):
    """Pure-JAX reference (mirrors the PyTorch forward), computed in f32."""
    x = x.astype(jnp.float32)
    a = a.astype(jnp.float32)
    b = b.astype(jnp.float32)
    t = jnp.tanh(x)
    ts = x - t
    if monotone:
        return jax.nn.softplus(a)[None, :] * t + jax.nn.softplus(b)[None, :] * ts
    return a[None, :] * t - b[None, :] * ts


if __name__ == "__main__":
    key = jax.random.PRNGKey(0)
    n, dim = 16, 128

    # Deterministic parameter init, matching nn.Parameter(torch.ones(dim)/dim).
    a = jnp.ones((dim,), jnp.float32) / dim
    b = jnp.ones((dim,), jnp.float32) / dim

    x = jax.random.normal(key, (n, dim), jnp.float32)

    # Monotone branch.
    out = jax.block_until_ready(wtanh(x, a, b, monotone=True))
    ref = wtanh_ref(x, a, b, monotone=True)
    assert out.shape == (n, dim) and out.dtype == x.dtype
    assert jnp.allclose(out, ref, atol=1e-5, rtol=1e-5), "mismatch (monotone)"

    # Non-monotone branch.
    out2 = jax.block_until_ready(wtanh(x, a, b, monotone=False))
    ref2 = wtanh_ref(x, a, b, monotone=False)
    assert jnp.allclose(out2, ref2, atol=1e-5, rtol=1e-5), "mismatch (non-monotone)"

    # Non-divisible batch (exercises pl.cdiv partial tail row block).
    x3 = jax.random.normal(jax.random.PRNGKey(1), (20, dim), jnp.float32)
    out3 = jax.block_until_ready(wtanh(x3, a, b, monotone=True, block_rows=8))
    ref3 = wtanh_ref(x3, a, b, monotone=True)
    assert jnp.allclose(out3, ref3, atol=1e-5, rtol=1e-5), "mismatch (tail block)"

    # bf16 I/O path (half the HBM bytes; bf16 compute on v6e/v7x, f32 on v5e).
    xb = x.astype(jnp.bfloat16)
    out4 = jax.block_until_ready(wtanh(xb, a, b, monotone=True))
    ref4 = wtanh_ref(xb, a, b, monotone=True)
    assert out4.dtype == jnp.bfloat16
    assert jnp.allclose(out4.astype(jnp.float32), ref4, atol=2e-2, rtol=2e-2), \
        "mismatch (bf16)"

    # Small feature dim (32): lane-folding path, output stays lane-dense inside the kernel.
    dim_s = 32
    a_s = jnp.ones((dim_s,), jnp.float32) / dim_s
    b_s = jnp.ones((dim_s,), jnp.float32) / dim_s
    x5 = jax.random.normal(jax.random.PRNGKey(2), (16, dim_s), jnp.float32)
    out5 = jax.block_until_ready(wtanh(x5, a_s, b_s, monotone=True))
    ref5 = wtanh_ref(x5, a_s, b_s, monotone=True)
    assert out5.shape == (16, dim_s)
    assert jnp.allclose(out5, ref5, atol=1e-5, rtol=1e-5), "mismatch (small dim fold)"

    print("KERNEL_OK")
</pallas_src>

<mosaic_0001>
module attributes {stable_mosaic.version = 11 : i64} {
  func.func @_wtanh_kernel(%arg0: i32, %arg1: i32, %arg2: memref<1x128xf32, #tpu.memory_space<vmem>>, %arg3: memref<1x128xf32, #tpu.memory_space<vmem>>, %arg4: memref<8x128xf32, #tpu.memory_space<vmem>>, %arg5: memref<8x128xf32, #tpu.memory_space<vmem>>) attributes {dimension_semantics = [#tpu.dimension_semantics<parallel>, #tpu.dimension_semantics<parallel>], iteration_bounds = array<i64: 1, 2>, scalar_prefetch = 0 : i64, scratch_operands = 0 : i64, tpu.core_type = #tpu.core_type<tc>, window_params = [{transform_indices = @transform_0, window_bounds = array<i64: 1, 128>}, {transform_indices = @transform_1, window_bounds = array<i64: 1, 128>}, {transform_indices = @transform_2, window_bounds = array<i64: 8, 128>}, {transform_indices = @transform_3, window_bounds = array<i64: 8, 128>}]} {
    %c0 = arith.constant 0 : index
    %c0_0 = arith.constant 0 : index
    %0 = vector.load %arg4[%c0, %c0_0] : memref<8x128xf32, #tpu.memory_space<vmem>>, vector<8x128xf32>
    %c0_1 = arith.constant 0 : index
    %c0_2 = arith.constant 0 : index
    %1 = vector.load %arg2[%c0_1, %c0_2] : memref<1x128xf32, #tpu.memory_space<vmem>>, vector<1x128xf32>
    %c0_3 = arith.constant 0 : index
    %c0_4 = arith.constant 0 : index
    %2 = vector.load %arg3[%c0_3, %c0_4] : memref<1x128xf32, #tpu.memory_space<vmem>>, vector<1x128xf32>
    %3 = math.tanh %0 : vector<8x128xf32>
    %4 = vector.broadcast %1 : vector<1x128xf32> to vector<8x128xf32>
    %5 = arith.mulf %4, %3 : vector<8x128xf32>
    %6 = vector.broadcast %2 : vector<1x128xf32> to vector<8x128xf32>
    %7 = arith.mulf %6, %0 : vector<8x128xf32>
    %8 = arith.addf %5, %7 : vector<8x128xf32>
    %c0_5 = arith.constant 0 : index
    %c0_6 = arith.constant 0 : index
    %9 = vector.load %arg5[%c0_5, %c0_6] : memref<8x128xf32, #tpu.memory_space<vmem>>, vector<8x128xf32>
    tpu.vector_store %arg5[%c0_5, %c0_6], %8 {strides = array<i32>} : memref<8x128xf32, #tpu.memory_space<vmem>>, vector<8x128xf32>,
    return
  }
  func.func @transform_0(%arg0: i32, %arg1: i32) -> (i32, i32) {
    %c0_i32 = arith.constant 0 : i32
    %c0_i32_0 = arith.constant 0 : i32
    return %c0_i32, %arg0 : i32, i32
  }
  func.func @transform_1(%arg0: i32, %arg1: i32) -> (i32, i32) {
    %c0_i32 = arith.constant 0 : i32
    %c0_i32_0 = arith.constant 0 : i32
    return %c0_i32, %arg0 : i32, i32
  }
  func.func @transform_2(%arg0: i32, %arg1: i32) -> (i32, i32) {
    %c0_i32 = arith.constant 0 : i32
    return %arg1, %arg0 : i32, i32
  }
  func.func @transform_3(%arg0: i32, %arg1: i32) -> (i32, i32) {
    %c0_i32 = arith.constant 0 : i32
    return %arg1, %arg0 : i32, i32
  }
}

</mosaic_0001>

<llo_original>
// kernel: tpu_custom_call.1
$region0: #{tpu_custom_call.1}
  #allocation0 [shape = 'u32[]', space=smem, size = 0x4, offset = 0x4, fixed_abs, tag = 'smem constant byte address 0x4 - core index']
  #allocation1 [shape = 'u32[144,128]{1,0:T(1,128)}', space=vmem, size = 0x12000, scoped, tag = 'internal scratch']
  %s0 = inlined_call_operand.hbm [shape: f32[1,128], index: 0, kind: input, shape index: {}]
  %s1 = inlined_call_operand.vmem [shape: f32[1,128], index: 1, kind: input, shape index: {}]
  %s2 = inlined_call_operand.hbm [shape: f32[16,128], index: 2, kind: input, shape index: {}]
  %s3 = inlined_call_operand.hbm [shape: f32[16,128], index: 3, kind: output, shape index: {}]
  %s4 = sld [smem:[#allocation0]]
  $region53: #{tpu_custom_call.1} parent=0
    _
  %s6 = ssub.s32 1, %s4
  %s7 = scalar_select 0, %s6, %s4
  $region1: #{tpu_custom_call.1} parent=0
    #allocation2 [shape = 'u8[512]{0}', space=vmem, size = 0x400, scoped, tag = 'input window, operand 0, single buffered']
    #allocation3 [shape = 's32[2]{0}', space=sflag, size = 0x8, scoped, tag = 'scoped memory for tpu_custom_call.1']
    #allocation4 [shape = 's32[2]{0}', space=sflag, size = 0x8, scoped, tag = 'scoped memory for tpu_custom_call.1']
    #allocation5 [shape = 'u8[8192]{0}', space=vmem, size = 0x2000, scoped, tag = 'input window, operand 2']
    #allocation6 [shape = 's32[2]{0}', space=sflag, size = 0x8, scoped, tag = 'scoped memory for tpu_custom_call.1']
    #allocation7 [shape = 'u8[8192]{0}', space=vmem, size = 0x2000, scoped, tag = 'output window, operand 0']
    %8 = vsyncpa [#allocation3], 0
    %9 = vsyncpa [#allocation6], 0
    %s10 = scalar_lea.sflag [#allocation6], 1
    %11 = vsyncpa %s10, 0
    %12 = vsyncpa [#allocation4], 0
    %s13 = scalar_lea.sflag [#allocation4], 1
    %14 = vsyncpa %s13, 0
    loop: start=0, step=1, limit=4
    $region2: #{tpu_custom_call.1} parent=1 // loop_pre_header
      _
    $region3: #{tpu_custom_call.1} parent=1 // loop_header
      %s16 = sphi 0, %s20
      %p17 = scmp.ge.s32.totalorder %s16, 4
      %s23 = sphi 0, %s35
      %s24 = sphi 0, %s31
      %s25 = sphi 0, %s23
      %s26 = sphi 0, %s24
      %s27 = sphi 0, %s25
      %s28 = sphi 0, %s26
      %s38 = sphi 0, %s40
      %s41 = sphi 0, %s38
      %s42 = sphi 0, %s41
      %s58 = sphi 0, %s42
      %s64 = sphi 0, %s66
      %s67 = sphi 0, %s64
      %s68 = sphi 0, %s67
      %s84 = sphi 0, %s68
      %s92 = sphi 0, %s94
      %s95 = sphi 0, %s92
      %s96 = sphi 0, %s95
      %s112 = sphi 0, %s96
      %s120 = sphi 0, %s122
      %s123 = sphi 0, %s120
      %s124 = sphi 0, %s123
      %s140 = sphi 0, %s124
    $region4: #{tpu_custom_call.1} parent=1 // loop_header_branch
      %19 = sbr.rel (%p17) target = $region8
    $region5: #{tpu_custom_call.1} parent=1 // loop_body
      %s21 = ssub.s32 %s16, 1
      %s22 = ssub.s32 %s16, 2
      %s29 = sadd.s32 1, %s24
      %p30 = scmp.ge.s32.totalorder %s29, 2
      %s31 = scalar_select %p30, 0, %s29
      %s32 = sadd.s32 1, %s23
      %s33 = scalar_select %p30, %s32, %s23
      %p34 = scmp.ge.s32.totalorder %s33, 1
      %s35 = scalar_select %p34, 0, %s33
      %s36 = ssub.s32 %s23, %s35
      %p37 = scmp.eq.s32.totalorder %s36, 0
      %s39 = sadd.s32 %s38, 1
      %s40 = scalar_select %p37, %s38, %s39
      %p43 = pneg %p37
      %p44 = scmp.eq.s32.totalorder %s16, 1
      %p45 = por %p43, %p44
      %p46 = scmp.ne.s32.totalorder %s38, %s41
      %p47 = scmp.eq.s32.totalorder %s16, 0
      %p48 = por %p46, %p47
      %p49 = scmp.ne.s32.totalorder %s38, %s41
      %p50 = scmp.eq.s32.totalorder %s21, 1
      %p51 = por %p49, %p50
      %p52 = scmp.ne.s32.totalorder %s41, %s42
      %p53 = scmp.eq.s32.totalorder %s21, 0
      %p54 = por %p52, %p53
      %p55 = scmp.ne.s32.totalorder %s41, %s42
      %p56 = scmp.eq.s32.totalorder %s22, 1
      %p57 = por %p55, %p56
      %p59 = scmp.ne.s32.totalorder %s42, %s58
      %p60 = scmp.eq.s32.totalorder %s22, 0
      %p61 = por %p59, %p60
      %s62 = ssub.s32 %s23, %s35
      %p63 = scmp.eq.s32.totalorder %s62, 0
      %s65 = sadd.s32 %s64, 1
      %s66 = scalar_select %p63, %s64, %s65
      %p69 = pneg %p63
      %p70 = scmp.eq.s32.totalorder %s16, 1
      %p71 = por %p69, %p70
      %p72 = scmp.ne.s32.totalorder %s64, %s67
      %p73 = scmp.eq.s32.totalorder %s16, 0
      %p74 = por %p72, %p73
      %p75 = scmp.ne.s32.totalorder %s64, %s67
      %p76 = scmp.eq.s32.totalorder %s21, 1
      %p77 = por %p75, %p76
      %p78 = scmp.ne.s32.totalorder %s67, %s68
      %p79 = scmp.eq.s32.totalorder %s21, 0
      %p80 = por %p78, %p79
      %p81 = scmp.ne.s32.totalorder %s67, %s68
      %p82 = scmp.eq.s32.totalorder %s22, 1
      %p83 = por %p81, %p82
      %p85 = scmp.ne.s32.totalorder %s68, %s84
      %p86 = scmp.eq.s32.totalorder %s22, 0
      %p87 = por %p85, %p86
      %s88 = ssub.s32 %s24, %s31
      %s89 = ssub.s32 %s23, %s35
      %s90 = sor.u32 %s88, %s89
      %p91 = scmp.eq.s32.totalorder %s90, 0
      %s93 = sadd.s32 %s92, 1
      %s94 = scalar_select %p91, %s92, %s93
      %p97 = pneg %p91
      %p98 = scmp.eq.s32.totalorder %s16, 1
      %p99 = por %p97, %p98
      %p100 = scmp.ne.s32.totalorder %s92, %s95
      %p101 = scmp.eq.s32.totalorder %s16, 0
      %p102 = por %p100, %p101
      %p103 = scmp.ne.s32.totalorder %s92, %s95
      %p104 = scmp.eq.s32.totalorder %s21, 1
      %p105 = por %p103, %p104
      %p106 = scmp.ne.s32.totalorder %s95, %s96
      %p107 = scmp.eq.s32.totalorder %s21, 0
      %p108 = por %p106, %p107
      %p109 = scmp.ne.s32.totalorder %s95, %s96
      %p110 = scmp.eq.s32.totalorder %s22, 1
      %p111 = por %p109, %p110
      %p113 = scmp.ne.s32.totalorder %s96, %s112
      %p114 = scmp.eq.s32.totalorder %s22, 0
      %p115 = por %p113, %p114
      %s116 = ssub.s32 %s24, %s31
      %s117 = ssub.s32 %s23, %s35
      %s118 = sor.u32 %s116, %s117
      %p119 = scmp.eq.s32.totalorder %s118, 0
      %s121 = sadd.s32 %s120, 1
      %s122 = scalar_select %p119, %s120, %s121
      %p125 = pneg %p119
      %p126 = scmp.eq.s32.totalorder %s16, 1
      %p127 = por %p125, %p126
      %p128 = scmp.ne.s32.totalorder %s120, %s123
      %p129 = scmp.eq.s32.totalorder %s16, 0
      %p130 = por %p128, %p129
      %p131 = scmp.ne.s32.totalorder %s120, %s123
      %p132 = scmp.eq.s32.totalorder %s21, 1
      %p133 = por %p131, %p132
      %p134 = scmp.ne.s32.totalorder %s123, %s124
      %p135 = scmp.eq.s32.totalorder %s21, 0
      %p136 = por %p134, %p135
      %p137 = scmp.ne.s32.totalorder %s123, %s124
      %p138 = scmp.eq.s32.totalorder %s22, 1
      %p139 = por %p137, %p138
      %p141 = scmp.ne.s32.totalorder %s124, %s140
      %p142 = scmp.eq.s32.totalorder %s22, 0
      %p143 = por %p141, %p142
      %p144 = scmp.le.s32.totalorder 1, %s16
      %p145 = scmp.lt.s32.totalorder %s16, 3
      %p146 = pnand %p144, %p145
      %p147 = pneg %p146
      // Predicated region
      $region9: #{tpu_custom_call.1} parent=5 // pred_check
        _
      $region10: #{tpu_custom_call.1} parent=5 // pred_check_branch
        %149 = sbr.rel (%p146) target = $region12
      $region11: #{tpu_custom_call.1} parent=5 // pred_region
        %s150 = ssub.s32 %s16, 1
        // Predicated region
        $region13: #{tpu_custom_call.1} parent=11 // pred_check
          %p151 = pneg %p54
        $region14: #{tpu_custom_call.1} parent=11 // pred_check_branch
          %153 = sbr.rel (%p151) target = $region16
        $region15: #{tpu_custom_call.1} parent=11 // pred_region
          %s155 = ssub.s32 16, 16
          %156 = vsyncadd [#allocation3], %s155
          %s157 = smul.addr %s25, 16
          %s158 = scalar_lea.hbm %s0, %s157
          %s160 = sshll.u32 [#allocation2], 4
          %s161 = int_to_ptr.vmem [resolvable:$true] %s160
          %163 = dma.hbm_to_vmem [thread:$0]  %s158, 16, %s161, [#allocation3]
        $region16: #{tpu_custom_call.1} parent=11 // pred_fallthru
          _
        // Predicated region
        $region17: #{tpu_custom_call.1} parent=11 // pred_check
          %p164 = pneg %p80
        $region18: #{tpu_custom_call.1} parent=11 // pred_check_branch
          %166 = sbr.rel (%p164) target = $region20
        $region19: #{tpu_custom_call.1} parent=11 // pred_region
          %p167 = scmp.lt.s32.totalorder %s25, 0
          %s168 = scalar_select %p167, %s25, 0
          %s169 = scalar_lea.vmem %s1, %s168
        $region20: #{tpu_custom_call.1} parent=11 // pred_fallthru
          _
      $region12: #{tpu_custom_call.1} parent=5 // pred_fallthru
        _
      %p170 = scmp.lt.s32.totalorder %s16, 2
      // Predicated region
      $region21: #{tpu_custom_call.1} parent=5 // pred_check
        %p171 = pneg %p170
      $region22: #{tpu_custom_call.1} parent=5 // pred_check_branch
        %173 = sbr.rel (%p171) target = $region24
      $region23: #{tpu_custom_call.1} parent=5 // pred_region
        // Predicated region
        $region25: #{tpu_custom_call.1} parent=23 // pred_check
          %p174 = pneg %p102
        $region26: #{tpu_custom_call.1} parent=23 // pred_check_branch
          %176 = sbr.rel (%p174) target = $region28
        $region27: #{tpu_custom_call.1} parent=23 // pred_region
          %s177 = sand.u32 %s92, 1
          %s178 = scalar_lea.sflag [#allocation6], %s177
          %s179 = sand.u32 %s92, 1
          %s180 = smul.addr %s179, 8
          %s181 = scalar_lea.vmem [#allocation5], %s180
          %s183 = ssub.s32 128, 128
          %184 = vsyncadd %s178, %s183
          %s185 = sadd.s32 %s23, %s24
          %s186 = smul.addr %s185, 128
          %s187 = scalar_lea.hbm %s2, %s186
          %s189 = sshll.u32 %s181, 4
          %s190 = int_to_ptr.vmem [resolvable:$true] %s189
          %192 = dma.hbm_to_vmem [thread:$0]  %s187, 128, %s190, %s178
        $region28: #{tpu_custom_call.1} parent=23 // pred_fallthru
          _
      $region24: #{tpu_custom_call.1} parent=5 // pred_fallthru
        _
      %p193 = scmp.le.s32.totalorder 1, %s16
      %p194 = scmp.lt.s32.totalorder %s16, 3
      %p195 = pnand %p193, %p194
      %p196 = pneg %p195
      // Predicated region
      $region29: #{tpu_custom_call.1} parent=5 // pred_check
        _
      $region30: #{tpu_custom_call.1} parent=5 // pred_check_branch
        %198 = sbr.rel (%p195) target = $region32
      $region31: #{tpu_custom_call.1} parent=5 // pred_region
        %s199 = ssub.s32 %s16, 1
        // Predicated region
        $region33: #{tpu_custom_call.1} parent=31 // pred_check
          %p200 = pneg %p54
        $region34: #{tpu_custom_call.1} parent=31 // pred_check_branch
          %202 = sbr.rel (%p200) target = $region36
        $region35: #{tpu_custom_call.1} parent=31 // pred_region
          %203 = dma.done [#allocation3], 16
        $region36: #{tpu_custom_call.1} parent=31 // pred_fallthru
          _
        %s204 = sand.u32 %s95, 1
        %s205 = scalar_lea.sflag [#allocation6], %s204
        %s206 = sand.u32 %s95, 1
        %s207 = smul.addr %s206, 8
        %s208 = scalar_lea.vmem [#allocation5], %s207
        // Predicated region
        $region37: #{tpu_custom_call.1} parent=31 // pred_check
          %p209 = pneg %p108
        $region38: #{tpu_custom_call.1} parent=31 // pred_check_branch
          %211 = sbr.rel (%p209) target = $region40
        $region39: #{tpu_custom_call.1} parent=31 // pred_region
          %212 = dma.done %s205, 128
        $region40: #{tpu_custom_call.1} parent=31 // pred_fallthru
          _
        %p213 = pneg %p54
        %p214 = pneg %p51
        %p215 = scmp.lt.s32.totalorder %s25, 0
        %s216 = scalar_select %p215, %s25, 0
        %s217 = scalar_lea.vmem %s1, %s216
        %p218 = pneg %p80
        %p219 = pneg %p77
        %s220 = sand.u32 %s95, 1
        %s221 = scalar_lea.sflag [#allocation6], %s220
        %s222 = sand.u32 %s95, 1
        %s223 = smul.addr %s222, 8
        %s224 = scalar_lea.vmem [#allocation5], %s223
        %p225 = pneg %p108
        %p226 = pneg %p105
        %p227 = pneg %p136
        %p228 = pneg %p133
        %s229 = sand.u32 %s123, 1
        %s230 = scalar_lea.sflag [#allocation4], %s229
        %s231 = sand.u32 %s123, 1
        %s232 = smul.addr %s231, 8
        %s233 = scalar_lea.vmem [#allocation7], %s232
        %p234 = scmp.lt.s32.totalorder %s25, 0
        %s235 = scalar_select %p234, %s25, 0
        %s236 = scalar_lea.vmem %s1, %s235
        %v237 = vld [vmem:[%s208] sm:$0xff]
        %v238 = vld [vmem:[#allocation2] sm:$0x1]
        %v239 = vld [vmem:[%s236] sm:$0x1]
        %v240 = vtanh.pop %v237
        %v242 = vlaneseq
        %v243 = vshrl.u32 %v242, 7
        %v244 = vsub.s32 0, %v243
        %v245 = vrot.slane %v238, %v244
        %v247 = vmul.f32 %v245, %v240
        %v249 = vlaneseq
        %v250 = vshrl.u32 %v249, 7
        %v251 = vsub.s32 0, %v250
        %v252 = vrot.slane %v239, %v251
        %v254 = vmul.f32 %v252, %v237
        %v255 = vadd.f32 %v247, %v254
        %256 = vst [vmem:[%s233] sm:$0xff] %v255
        %s257 = sand.u32 %s123, 1
        %s258 = scalar_lea.sflag [#allocation4], %s257
        %s259 = sand.u32 %s123, 1
        %s260 = smul.addr %s259, 8
        %s261 = scalar_lea.vmem [#allocation7], %s260
        // Predicated region
        $region41: #{tpu_custom_call.1} parent=31 // pred_check
          %p262 = pneg %p133
        $region42: #{tpu_custom_call.1} parent=31 // pred_check_branch
          %264 = sbr.rel (%p262) target = $region44
        $region43: #{tpu_custom_call.1} parent=31 // pred_region
          %s266 = ssub.s32 128, 128
          %267 = vsyncadd %s258, %s266
          %s268 = sadd.s32 %s25, %s26
          %s269 = smul.addr %s268, 128
          %s270 = scalar_lea.hbm %s3, %s269
          %s272 = sshll.u32 %s261, 4
          %s273 = int_to_ptr.vmem [resolvable:$true] %s272
          %275 = dma.vmem_to_hbm [thread:$0]  %s273, 128, %s270, %s258
        $region44: #{tpu_custom_call.1} parent=31 // pred_fallthru
          _
      $region32: #{tpu_custom_call.1} parent=5 // pred_fallthru
        _
      %p276 = scmp.le.s32.totalorder 2, %s16
      // Predicated region
      $region45: #{tpu_custom_call.1} parent=5 // pred_check
        %p277 = pneg %p276
      $region46: #{tpu_custom_call.1} parent=5 // pred_check_branch
        %279 = sbr.rel (%p277) target = $region48
      $region47: #{tpu_custom_call.1} parent=5 // pred_region
        %s280 = ssub.s32 %s16, 2
        // Predicated region
        $region49: #{tpu_custom_call.1} parent=47 // pred_check
          %p281 = pneg %p139
        $region50: #{tpu_custom_call.1} parent=47 // pred_check_branch
          %283 = sbr.rel (%p281) target = $region52
        $region51: #{tpu_custom_call.1} parent=47 // pred_region
          %s284 = sand.u32 %s124, 1
          %s285 = scalar_lea.sflag [#allocation4], %s284
          %s286 = sand.u32 %s124, 1
          %s287 = smul.addr %s286, 8
          %s288 = scalar_lea.vmem [#allocation7], %s287
          %289 = dma.done %s285, 128
        $region52: #{tpu_custom_call.1} parent=47 // pred_fallthru
          _
      $region48: #{tpu_custom_call.1} parent=5 // pred_fallthru
        _
    $region6: #{tpu_custom_call.1} parent=1 // loop_footer
      %s20 = sadd.s32 1, %s16
    $region7: #{tpu_custom_call.1} parent=1 // loop_footer_branch
      %15 = sbr.rel target = $region3
    $region8: #{tpu_custom_call.1} parent=1 // loop_exit
      _
    %290 = vsyncpa [#allocation3], 1
    %s291 = scalar_lea.sflag [#allocation3], 1
    %292 = vsyncpa %s291, 1
    %293 = vsyncpa [#allocation6], 1
    %s294 = scalar_lea.sflag [#allocation6], 1
    %295 = vsyncpa %s294, 1
    %296 = vsyncpa [#allocation4], 1
    %s297 = scalar_lea.sflag [#allocation4], 1
    %298 = vsyncpa %s297, 1

</llo_original>
